<compile_context>
chip_gen: v7x
topology: tpu7x:2x2x1
jax: 0.10.0
libtpu: 0.0.40
codegen_flags: <defaults>
</compile_context>

<pallas_src>
import jax
import jax.numpy as jnp
from jax.experimental import pallas as pl
from jax.experimental.pallas import tpu as pltpu


def _sum_xw_kernel(x_ref, w_ref, out_ref):
    """One grid step: fold one K-slab's contribution into a resident scalar.

    Grid = (nc, nk_per_core):
      axis 0: core-parallel split of the K tiles (independent partial sums)
      axis 1: this core's K tiles, sequential ("arbitrary") reduction
    x_ref : (M, tk) slab of X -> column sums (1, tk)   [cross-sublane reduce]
    w_ref : (tk, N) slab of W -> row sums    (tk, 1)   [cross-lane reduce]
    out_ref: (1, 1, 1) per-core partial; same block index for all k, so it
             stays VMEM-resident across the whole K sweep (accumulator).
    """
    k = pl.program_id(1)

    @pl.when(k == 0)
    def _():
        out_ref[...] = jnp.zeros_like(out_ref)

    cx = jnp.sum(x_ref[...].astype(jnp.float32), axis=0, keepdims=True)   # (1, tk)
    rw = jnp.sum(w_ref[...].astype(jnp.float32), axis=1, keepdims=True)   # (tk, 1)
    # Tiny MXU dot; sits in the otherwise-idle vector-extended slot.
    out_ref[...] += jnp.dot(cx, rw,
                            preferred_element_type=jnp.float32).reshape(1, 1, 1)


def _chip_is_v7x():
    try:
        return "v7" in jax.devices()[0].device_kind.lower()
    except Exception:
        return False


def _pick_tile(M, K, N, itemsize, tk_max, nc_pref, vmem_budget):
    """Pick (tk, nc): largest K-slab (multiple of 128, divides K, <= tk_max)
    whose double-buffered footprint fits the VMEM budget, preferring a tile
    count that splits evenly across nc_pref cores."""
    def footprint(tk):
        return 2 * (M * tk + tk * N) * itemsize   # 2 inputs double-buffered

    cands = [t for t in range(128, min(tk_max, K) + 1, 128) if K % t == 0]
    cands.sort(reverse=True)

    core_options = [nc_pref, 1] if nc_pref > 1 else [1]
    for nc in core_options:
        for tk in cands:
            if (K // tk) % nc == 0 and footprint(tk) <= vmem_budget:
                return tk, nc
    # Fallback: K not a multiple of 128 (or nothing fits) -> single full slab.
    return K, 1


def test_gradient_forward(X, W, *, tk_max=768):
    """Pallas implementation of TestGradient.forward(): (sum(X @ W))**2."""
    M, K = X.shape
    K2, N = W.shape
    assert K == K2, (X.shape, W.shape)

    itemsize = max(X.dtype.itemsize, W.dtype.itemsize)
    is_v7x = _chip_is_v7x()
    # Only v7x has 2 TensorCores; elsewhere the split would just constrain tiles.
    nc_pref = 2 if is_v7x else 1
    # Per-generation cap on the scoped-VMEM limit we are willing to request.
    vmem_cap = (48 << 20) if is_v7x else (96 << 20)

    tk, nc = _pick_tile(M, K, N, itemsize, tk_max, nc_pref,
                        vmem_budget=vmem_cap - (8 << 20))
    nk_total = pl.cdiv(K, tk)
    nk_pc = nk_total // nc

    # Derive the VMEM limit from the actual footprint (+ slack), clamped.
    slab_bytes = 2 * (M * tk + tk * N) * itemsize
    vmem_limit = int(min(vmem_cap, max(32 << 20, slab_bytes + (8 << 20))))

    bytes_in = X.size * X.dtype.itemsize + W.size * W.dtype.itemsize

    partials = pl.pallas_call(
        _sum_xw_kernel,
        out_shape=jax.ShapeDtypeStruct((nc, 1, 1), jnp.float32),
        grid_spec=pltpu.PrefetchScalarGridSpec(
            num_scalar_prefetch=0,
            grid=(nc, nk_pc),
            in_specs=[
                # Full-M slab of X for this K tile.
                pl.BlockSpec((M, tk), lambda c, k: (0, c * nk_pc + k)),
                # Full-N slab of W for the same K tile.
                pl.BlockSpec((tk, N), lambda c, k: (c * nk_pc + k, 0)),
            ],
            # One (1,1,1) partial per core; constant index across k keeps it
            # VMEM-resident for the whole K sweep (direct accumulation).
            out_specs=pl.BlockSpec((1, 1, 1), lambda c, k: (c, 0, 0)),
        ),
        compiler_params=pltpu.CompilerParams(
            # Axis 0 (core split) iterations are independent -> parallel
            # (maps to the 2nd TensorCore on v7x; size-1 elsewhere).
            # Axis 1 accumulates into the resident output -> "arbitrary".
            dimension_semantics=("parallel", "arbitrary"),
            vmem_limit_bytes=vmem_limit,
        ),
        cost_estimate=pl.CostEstimate(
            flops=M * K + K * N + 2 * K,  # two streaming reductions + length-K dot
            transcendentals=0,
            bytes_accessed=bytes_in + nc * 4,
        ),
    )(X, W)

    s = jnp.sum(partials)
    return s * s


if __name__ == "__main__":
    # Original module uses (batch, dim_input, dim_output) = (1536, 1536, 4608)
    # with normal_() init; smaller shapes with the same structure here (K large
    # enough to exercise the multi-step K reduction and, on v7x, the core split).
    batch, dim_input, dim_output = 256, 1024, 512

    key = jax.random.PRNGKey(0)
    kx, kw = jax.random.split(key)
    X = jax.random.normal(kx, (batch, dim_input), dtype=jnp.float32)
    W = jax.random.normal(kw, (dim_input, dim_output), dtype=jnp.float32)

    result = jax.jit(test_gradient_forward)(X, W)
    result = jax.block_until_ready(result)

    # Reference check (plain JAX, full-precision matmul).  The sum of many
    # zero-mean terms is heavily cancelled, and squaring doubles the relative
    # error, so use a modest tolerance.
    ref_s = jnp.sum(jnp.dot(X, W, precision=jax.lax.Precision.HIGHEST))
    ref = ref_s * ref_s
    assert jnp.allclose(result, ref, rtol=2e-2, atol=1e-3), (result, ref)

    print("KERNEL_OK")
</pallas_src>

<mosaic_0001>
module attributes {stable_mosaic.version = 11 : i64} {
  func.func @_sum_xw_kernel(%arg0: i32, %arg1: i32, %arg2: memref<256x512xf32, #tpu.memory_space<vmem>>, %arg3: memref<512x512xf32, #tpu.memory_space<vmem>>, %arg4: memref<1x1x1xf32, #tpu.memory_space<vmem>>) attributes {dimension_semantics = [#tpu.dimension_semantics<parallel>, #tpu.dimension_semantics<arbitrary>], iteration_bounds = array<i64: 1, 2>, scalar_prefetch = 0 : i64, scratch_operands = 0 : i64, tpu.core_type = #tpu.core_type<tc>, window_params = [{transform_indices = @transform_0, window_bounds = array<i64: 256, 512>}, {transform_indices = @transform_1, window_bounds = array<i64: 512, 512>}, {transform_indices = @transform_2, window_bounds = array<i64: 1, 1, 1>}]} {
    %c0_i32 = arith.constant 0 : i32
    %0 = arith.cmpi eq, %arg1, %c0_i32 : i32
    %1 = arith.extui %0 : i1 to i32
    %c0_i32_0 = arith.constant 0 : i32
    %2 = arith.cmpi ne, %1, %c0_i32_0 : i32
    scf.if %2 {
      %cst_12 = arith.constant 0.000000e+00 : f32
      %14 = vector.broadcast %cst_12 : f32 to vector<1x1x1xf32>
      %c0_13 = arith.constant 0 : index
      %c0_14 = arith.constant 0 : index
      %c0_15 = arith.constant 0 : index
      %15 = vector.load %arg4[%c0_13, %c0_14, %c0_15] : memref<1x1x1xf32, #tpu.memory_space<vmem>>, vector<1x1x1xf32>
      tpu.vector_store %arg4[%c0_13, %c0_14, %c0_15], %14 {strides = array<i32>} : memref<1x1x1xf32, #tpu.memory_space<vmem>>, vector<1x1x1xf32>,
    } else {
    }
    %c0 = arith.constant 0 : index
    %c0_1 = arith.constant 0 : index
    %3 = vector.load %arg2[%c0, %c0_1] : memref<256x512xf32, #tpu.memory_space<vmem>>, vector<256x512xf32>
    %cst = arith.constant dense<0.000000e+00> : vector<512xf32>
    %4 = vector.multi_reduction <add>, %3, %cst [0] : vector<256x512xf32> to vector<512xf32>
    %5 = vector.shape_cast %4 : vector<512xf32> to vector<1x512xf32>
    %c0_2 = arith.constant 0 : index
    %c0_3 = arith.constant 0 : index
    %6 = vector.load %arg3[%c0_2, %c0_3] : memref<512x512xf32, #tpu.memory_space<vmem>>, vector<512x512xf32>
    %cst_4 = arith.constant dense<0.000000e+00> : vector<512xf32>
    %7 = vector.multi_reduction <add>, %6, %cst_4 [1] : vector<512x512xf32> to vector<512xf32>
    %8 = vector.shape_cast %7 : vector<512xf32> to vector<512x1xf32>
    %c0_5 = arith.constant 0 : index
    %c0_6 = arith.constant 0 : index
    %c0_7 = arith.constant 0 : index
    %9 = vector.load %arg4[%c0_5, %c0_6, %c0_7] : memref<1x1x1xf32, #tpu.memory_space<vmem>>, vector<1x1x1xf32>
    %cst_8 = arith.constant dense<0.000000e+00> : vector<1x1xf32>
    %10 = tpu.matmul %5, %8, %cst_8 {dimension_numbers = #tpu.dot_dimension_numbers<[1], [0], [0], [1], [0, 0, 1, 1], [], []>} : vector<1x512xf32>, vector<512x1xf32>, vector<1x1xf32> -> vector<1x1xf32>
    %11 = vector.shape_cast %10 : vector<1x1xf32> to vector<1x1x1xf32>
    %12 = arith.addf %9, %11 : vector<1x1x1xf32>
    %c0_9 = arith.constant 0 : index
    %c0_10 = arith.constant 0 : index
    %c0_11 = arith.constant 0 : index
    %13 = vector.load %arg4[%c0_9, %c0_10, %c0_11] : memref<1x1x1xf32, #tpu.memory_space<vmem>>, vector<1x1x1xf32>
    tpu.vector_store %arg4[%c0_9, %c0_10, %c0_11], %12 {strides = array<i32>} : memref<1x1x1xf32, #tpu.memory_space<vmem>>, vector<1x1x1xf32>,
    return
  }
  func.func @transform_0(%arg0: i32, %arg1: i32) -> (i32, i32) {
    %c2_i32 = arith.constant 2 : i32
    %0 = arith.muli %arg0, %c2_i32 : i32
    %1 = arith.addi %0, %arg1 : i32
    %c0_i32 = arith.constant 0 : i32
    %c0_i32_0 = arith.constant 0 : i32
    return %c0_i32, %1 : i32, i32
  }
  func.func @transform_1(%arg0: i32, %arg1: i32) -> (i32, i32) {
    %c2_i32 = arith.constant 2 : i32
    %0 = arith.muli %arg0, %c2_i32 : i32
    %1 = arith.addi %0, %arg1 : i32
    %c0_i32 = arith.constant 0 : i32
    %c0_i32_0 = arith.constant 0 : i32
    return %1, %c0_i32 : i32, i32
  }
  func.func @transform_2(%arg0: i32, %arg1: i32) -> (i32, i32, i32) {
    %c0_i32 = arith.constant 0 : i32
    %c0_i32_0 = arith.constant 0 : i32
    %c0_i32_1 = arith.constant 0 : i32
    return %arg0, %c0_i32, %c0_i32_0 : i32, i32, i32
  }
}

</mosaic_0001>

<llo_original>
// kernel: test_gradient_forward.1
$region0: #{test_gradient_forward.1}
  #allocation0 [shape = 'u32[]', space=smem, size = 0x4, offset = 0x4, fixed_abs, tag = 'smem constant byte address 0x4 - core index']
  #allocation1 [shape = 'u32[144,128]{1,0:T(1,128)}', space=vmem, size = 0x12000, scoped, tag = 'internal scratch']
  %s0 = inlined_call_operand.hbm [shape: f32[256,1024], index: 0, kind: input, shape index: {}]
  %s1 = inlined_call_operand.hbm [shape: f32[1024,512], index: 1, kind: input, shape index: {}]
  %s2 = inlined_call_operand.hbm [shape: f32[1,1,1], index: 2, kind: output, shape index: {}]
  %s3 = sld [smem:[#allocation0]]
  $region53: #{test_gradient_forward.1} parent=0
    _
  %s5 = ssub.s32 1, %s3
  %s6 = scalar_select 0, %s5, %s3
  $region1: #{test_gradient_forward.1} parent=0
    #allocation2 [shape = 'u8[1048576]{0}', space=vmem, size = 0x100000, scoped, tag = 'input window, operand 0']
    #allocation3 [shape = 's32[2]{0}', space=sflag, size = 0x8, scoped, tag = 'scoped memory for test_gradient_forward.1']
    #allocation4 [shape = 's32[2]{0}', space=sflag, size = 0x8, scoped, tag = 'scoped memory for test_gradient_forward.1']
    #allocation5 [shape = 'u8[2097152]{0}', space=vmem, size = 0x200000, scoped, tag = 'input window, operand 1']
    #allocation6 [shape = 's32[2]{0}', space=sflag, size = 0x8, scoped, tag = 'scoped memory for test_gradient_forward.1']
    #allocation7 [shape = 'u8[512]{0}', space=vmem, size = 0x400, scoped, tag = 'output window, operand 0, single buffered']
    %7 = vsyncpa [#allocation3], 0
    %s8 = scalar_lea.sflag [#allocation3], 1
    %9 = vsyncpa %s8, 0
    %10 = vsyncpa [#allocation6], 0
    %s11 = scalar_lea.sflag [#allocation6], 1
    %12 = vsyncpa %s11, 0
    %13 = vsyncpa [#allocation4], 0
    loop: start=0, step=1, limit=4
    $region2: #{test_gradient_forward.1} parent=1 // loop_pre_header
      _
    $region3: #{test_gradient_forward.1} parent=1 // loop_header
      %s15 = sphi 0, %s19
      %p16 = scmp.ge.s32.totalorder %s15, 4
      %s22 = sphi 0, %s34
      %s23 = sphi 0, %s30
      %s24 = sphi 0, %s22
      %s25 = sphi 0, %s23
      %s26 = sphi 0, %s24
      %s27 = sphi 0, %s25
      %s41 = sphi 0, %s43
      %s44 = sphi 0, %s41
      %s45 = sphi 0, %s44
      %s61 = sphi 0, %s45
      %s71 = sphi 0, %s73
      %s74 = sphi 0, %s71
      %s75 = sphi 0, %s74
      %s91 = sphi 0, %s75
      %s97 = sphi 0, %s99
      %s100 = sphi 0, %s97
      %s101 = sphi 0, %s100
      %s117 = sphi 0, %s101
    $region4: #{test_gradient_forward.1} parent=1 // loop_header_branch
      %18 = sbr.rel (%p16) target = $region8
    $region5: #{test_gradient_forward.1} parent=1 // loop_body
      %s20 = ssub.s32 %s15, 1
      %s21 = ssub.s32 %s15, 2
      %s28 = sadd.s32 1, %s23
      %p29 = scmp.ge.s32.totalorder %s28, 2
      %s30 = scalar_select %p29, 0, %s28
      %s31 = sadd.s32 1, %s22
      %s32 = scalar_select %p29, %s31, %s22
      %p33 = scmp.ge.s32.totalorder %s32, 1
      %s34 = scalar_select %p33, 0, %s32
      %s35 = smul.u32 %s22, 2
      %s36 = sadd.s32 %s35, %s23
      %s37 = smul.u32 %s34, 2
      %s38 = sadd.s32 %s37, %s30
      %s39 = ssub.s32 %s36, %s38
      %p40 = scmp.eq.s32.totalorder %s39, 0
      %s42 = sadd.s32 %s41, 1
      %s43 = scalar_select %p40, %s41, %s42
      %p46 = pneg %p40
      %p47 = scmp.eq.s32.totalorder %s15, 1
      %p48 = por %p46, %p47
      %p49 = scmp.ne.s32.totalorder %s41, %s44
      %p50 = scmp.eq.s32.totalorder %s15, 0
      %p51 = por %p49, %p50
      %p52 = scmp.ne.s32.totalorder %s41, %s44
      %p53 = scmp.eq.s32.totalorder %s20, 1
      %p54 = por %p52, %p53
      %p55 = scmp.ne.s32.totalorder %s44, %s45
      %p56 = scmp.eq.s32.totalorder %s20, 0
      %p57 = por %p55, %p56
      %p58 = scmp.ne.s32.totalorder %s44, %s45
      %p59 = scmp.eq.s32.totalorder %s21, 1
      %p60 = por %p58, %p59
      %p62 = scmp.ne.s32.totalorder %s45, %s61
      %p63 = scmp.eq.s32.totalorder %s21, 0
      %p64 = por %p62, %p63
      %s65 = smul.u32 %s22, 2
      %s66 = sadd.s32 %s65, %s23
      %s67 = smul.u32 %s34, 2
      %s68 = sadd.s32 %s67, %s30
      %s69 = ssub.s32 %s66, %s68
      %p70 = scmp.eq.s32.totalorder %s69, 0
      %s72 = sadd.s32 %s71, 1
      %s73 = scalar_select %p70, %s71, %s72
      %p76 = pneg %p70
      %p77 = scmp.eq.s32.totalorder %s15, 1
      %p78 = por %p76, %p77
      %p79 = scmp.ne.s32.totalorder %s71, %s74
      %p80 = scmp.eq.s32.totalorder %s15, 0
      %p81 = por %p79, %p80
      %p82 = scmp.ne.s32.totalorder %s71, %s74
      %p83 = scmp.eq.s32.totalorder %s20, 1
      %p84 = por %p82, %p83
      %p85 = scmp.ne.s32.totalorder %s74, %s75
      %p86 = scmp.eq.s32.totalorder %s20, 0
      %p87 = por %p85, %p86
      %p88 = scmp.ne.s32.totalorder %s74, %s75
      %p89 = scmp.eq.s32.totalorder %s21, 1
      %p90 = por %p88, %p89
      %p92 = scmp.ne.s32.totalorder %s75, %s91
      %p93 = scmp.eq.s32.totalorder %s21, 0
      %p94 = por %p92, %p93
      %s95 = ssub.s32 %s22, %s34
      %p96 = scmp.eq.s32.totalorder %s95, 0
      %s98 = sadd.s32 %s97, 1
      %s99 = scalar_select %p96, %s97, %s98
      %p102 = pneg %p96
      %p103 = scmp.eq.s32.totalorder %s15, 1
      %p104 = por %p102, %p103
      %p105 = scmp.ne.s32.totalorder %s97, %s100
      %p106 = scmp.eq.s32.totalorder %s15, 0
      %p107 = por %p105, %p106
      %p108 = scmp.ne.s32.totalorder %s97, %s100
      %p109 = scmp.eq.s32.totalorder %s20, 1
      %p110 = por %p108, %p109
      %p111 = scmp.ne.s32.totalorder %s100, %s101
      %p112 = scmp.eq.s32.totalorder %s20, 0
      %p113 = por %p111, %p112
      %p114 = scmp.ne.s32.totalorder %s100, %s101
      %p115 = scmp.eq.s32.totalorder %s21, 1
      %p116 = por %p114, %p115
      %p118 = scmp.ne.s32.totalorder %s101, %s117
      %p119 = scmp.eq.s32.totalorder %s21, 0
      %p120 = por %p118, %p119
      %p121 = scmp.le.s32.totalorder 1, %s15
      %p122 = scmp.lt.s32.totalorder %s15, 3
      %p123 = pnand %p121, %p122
      %p124 = pneg %p123
      // Predicated region
      $region9: #{test_gradient_forward.1} parent=5 // pred_check
        _
      $region10: #{test_gradient_forward.1} parent=5 // pred_check_branch
        %126 = sbr.rel (%p123) target = $region12
      $region11: #{test_gradient_forward.1} parent=5 // pred_region
        %s127 = ssub.s32 %s15, 1
      $region12: #{test_gradient_forward.1} parent=5 // pred_fallthru
        _
      %p128 = scmp.lt.s32.totalorder %s15, 2
      // Predicated region
      $region13: #{test_gradient_forward.1} parent=5 // pred_check
        %p129 = pneg %p128
      $region14: #{test_gradient_forward.1} parent=5 // pred_check_branch
        %131 = sbr.rel (%p129) target = $region16
      $region15: #{test_gradient_forward.1} parent=5 // pred_region
        // Predicated region
        $region17: #{test_gradient_forward.1} parent=15 // pred_check
          %p132 = pneg %p51
        $region18: #{test_gradient_forward.1} parent=15 // pred_check_branch
          %134 = sbr.rel (%p132) target = $region20
        $region19: #{test_gradient_forward.1} parent=15 // pred_region
          %s135 = sand.u32 %s41, 1
          %s136 = scalar_lea.sflag [#allocation3], %s135
          %s137 = sand.u32 %s41, 1
          %s138 = smul.addr %s137, 1024
          %s139 = scalar_lea.vmem [#allocation2], %s138
          %s140 = smul.u32 %s22, 2
          %s141 = sadd.s32 %s140, %s23
          %s142 = smul.u32 4, %s141
          %s144 = ssub.s32 16384, 16384
          %145 = vsyncadd %s136, %s144
          %s146 = smul.addr %s142, 128
          %s147 = scalar_lea.hbm %s0, %s146
          %s148 = sshll.u32 %s139, 4
          %s149 = int_to_ptr.vmem [resolvable:$true] %s148
          %154 = dma.hbm_to_vmem [thread:$0]  %s147, 16384, %s149, %s136, 1024, 512, 32
        $region20: #{test_gradient_forward.1} parent=15 // pred_fallthru
          _
        // Predicated region
        $region21: #{test_gradient_forward.1} parent=15 // pred_check
          %p155 = pneg %p81
        $region22: #{test_gradient_forward.1} parent=15 // pred_check_branch
          %157 = sbr.rel (%p155) target = $region24
        $region23: #{test_gradient_forward.1} parent=15 // pred_region
          %s158 = sand.u32 %s71, 1
          %s159 = scalar_lea.sflag [#allocation6], %s158
          %s160 = sand.u32 %s71, 1
          %s161 = smul.addr %s160, 2048
          %s162 = scalar_lea.vmem [#allocation5], %s161
          %s163 = smul.u32 %s22, 2
          %s164 = sadd.s32 %s163, %s23
          %s165 = smul.u32 64, %s164
          %s167 = ssub.s32 32768, 32768
          %168 = vsyncadd %s159, %s167
          %s169 = smul.addr %s165, 4
          %s170 = smul.addr %s169, 128
          %s171 = scalar_lea.hbm %s1, %s170
          %s172 = sshll.u32 %s162, 4
          %s173 = int_to_ptr.vmem [resolvable:$true] %s172
          %178 = dma.hbm_to_vmem [thread:$0]  %s171, 32768, %s173, %s159, 512, 512, 32
        $region24: #{test_gradient_forward.1} parent=15 // pred_fallthru
          _
      $region16: #{test_gradient_forward.1} parent=5 // pred_fallthru
        _
      %p179 = scmp.le.s32.totalorder 1, %s15
      %p180 = scmp.lt.s32.totalorder %s15, 3
      %p181 = pnand %p179, %p180
      %p182 = pneg %p181
      // Predicated region
      $region25: #{test_gradient_forward.1} parent=5 // pred_check
        _
      $region26: #{test_gradient_forward.1} parent=5 // pred_check_branch
        %184 = sbr.rel (%p181) target = $region28
      $region27: #{test_gradient_forward.1} parent=5 // pred_region
        %s185 = ssub.s32 %s15, 1
        %s186 = sand.u32 %s44, 1
        %s187 = scalar_lea.sflag [#allocation3], %s186
        %s188 = sand.u32 %s44, 1
        %s189 = smul.addr %s188, 1024
        %s190 = scalar_lea.vmem [#allocation2], %s189
        // Predicated region
        $region29: #{test_gradient_forward.1} parent=27 // pred_check
          %p191 = pneg %p57
        $region30: #{test_gradient_forward.1} parent=27 // pred_check_branch
          %193 = sbr.rel (%p191) target = $region32
        $region31: #{test_gradient_forward.1} parent=27 // pred_region
          %194 = dma.done %s187, 16384
        $region32: #{test_gradient_forward.1} parent=27 // pred_fallthru
          _
        %s195 = sand.u32 %s74, 1
        %s196 = scalar_lea.sflag [#allocation6], %s195
        %s197 = sand.u32 %s74, 1
        %s198 = smul.addr %s197, 2048
        %s199 = scalar_lea.vmem [#allocation5], %s198
        // Predicated region
        $region33: #{test_gradient_forward.1} parent=27 // pred_check
          %p200 = pneg %p87
        $region34: #{test_gradient_forward.1} parent=27 // pred_check_branch
          %202 = sbr.rel (%p200) target = $region36
        $region35: #{test_gradient_forward.1} parent=27 // pred_region
          %203 = dma.done %s196, 32768
        $region36: #{test_gradient_forward.1} parent=27 // pred_fallthru
          _
        %s204 = sand.u32 %s44, 1
        %s205 = scalar_lea.sflag [#allocation3], %s204
        %s206 = sand.u32 %s44, 1
        %s207 = smul.addr %s206, 1024
        %s208 = scalar_lea.vmem [#allocation2], %s207
        %p209 = pneg %p57
        %p210 = pneg %p54
        %s211 = sand.u32 %s74, 1
        %s212 = scalar_lea.sflag [#allocation6], %s211
        %s213 = sand.u32 %s74, 1
        %s214 = smul.addr %s213, 2048
        %s215 = scalar_lea.vmem [#allocation5], %s214
        %p216 = pneg %p87
        %p217 = pneg %p84
        %p218 = pneg %p113
        %p219 = pneg %p110
        %s220 = smul.u32 %s24, 2
        %s221 = sadd.s32 %s220, %s25
        %s222 = smul.u32 4, %s221
        %s223 = smul.u32 %s24, 2
        %s224 = sadd.s32 %s223, %s25
        %s225 = smul.u32 64, %s224
        %p226 = scmp.eq.s32.totalorder %s25, 0
        // Predicated region
        $region37: #{test_gradient_forward.1} parent=27 // pred_check
          %p227 = pneg %p226
        $region38: #{test_gradient_forward.1} parent=27 // pred_check_branch
          %229 = sbr.rel (%p227) target = $region40
        $region39: #{test_gradient_forward.1} parent=27 // pred_region
          %vm230 = vcmask 0
          %231 = vst.msk [vmem:[#allocation7] sm:$0x1] %vm230, 0.0
        $region40: #{test_gradient_forward.1} parent=27 // pred_fallthru
          _
        %v232 = vld [vmem:[%s190] sm:$0xff]
        %v233 = vld [vmem:[%s190 + $0x8] sm:$0xff]
        %v234 = vld [vmem:[%s190 + $0x10] sm:$0xff]
        %v235 = vld [vmem:[%s190 + $0x18] sm:$0xff]
        %v236 = vld [vmem:[%s190 + $0x20] sm:$0xff]
        %v237 = vld [vmem:[%s190 + $0x28] sm:$0xff]
        %v238 = vld [vmem:[%s190 + $0x30] sm:$0xff]
        %v239 = vld [vmem:[%s190 + $0x38] sm:$0xff]
        %v240 = vld [vmem:[%s190 + $0x40] sm:$0xff]
        %v241 = vld [vmem:[%s190 + $0x48] sm:$0xff]
        %v242 = vld [vmem:[%s190 + $0x50] sm:$0xff]
        %v243 = vld [vmem:[%s190 + $0x58] sm:$0xff]
        %v244 = vld [vmem:[%s190 + $0x60] sm:$0xff]
        %v245 = vld [vmem:[%s190 + $0x68] sm:$0xff]
        %v246 = vld [vmem:[%s190 + $0x70] sm:$0xff]
        %v247 = vld [vmem:[%s190 + $0x78] sm:$0xff]
        %v248 = vld [vmem:[%s190 + $0x80] sm:$0xff]
        %v249 = vld [vmem:[%s190 + $0x88] sm:$0xff]
        %v250 = vld [vmem:[%s190 + $0x90] sm:$0xff]
        %v251 = vld [vmem:[%s190 + $0x98] sm:$0xff]
        %v252 = vld [vmem:[%s190 + $0xa0] sm:$0xff]
        %v253 = vld [vmem:[%s190 + $0xa8] sm:$0xff]
        %v254 = vld [vmem:[%s190 + $0xb0] sm:$0xff]
        %v255 = vld [vmem:[%s190 + $0xb8] sm:$0xff]
        %v256 = vld [vmem:[%s190 + $0xc0] sm:$0xff]
        %v257 = vld [vmem:[%s190 + $0xc8] sm:$0xff]
        %v258 = vld [vmem:[%s190 + $0xd0] sm:$0xff]
        %v259 = vld [vmem:[%s190 + $0xd8] sm:$0xff]
        %v260 = vld [vmem:[%s190 + $0xe0] sm:$0xff]
        %v261 = vld [vmem:[%s190 + $0xe8] sm:$0xff]
        %v262 = vld [vmem:[%s190 + $0xf0] sm:$0xff]
        %v263 = vld [vmem:[%s190 + $0xf8] sm:$0xff]
        %v264 = vld [vmem:[%s190 + $0x100] sm:$0xff]
        %v265 = vld [vmem:[%s190 + $0x108] sm:$0xff]
        %v266 = vld [vmem:[%s190 + $0x110] sm:$0xff]
        %v267 = vld [vmem:[%s190 + $0x118] sm:$0xff]
        %v268 = vld [vmem:[%s190 + $0x120] sm:$0xff]
        %v269 = vld [vmem:[%s190 + $0x128] sm:$0xff]
        %v270 = vld [vmem:[%s190 + $0x130] sm:$0xff]
        %v271 = vld [vmem:[%s190 + $0x138] sm:$0xff]
        %v272 = vld [vmem:[%s190 + $0x140] sm:$0xff]
        %v273 = vld [vmem:[%s190 + $0x148] sm:$0xff]
        %v274 = vld [vmem:[%s190 + $0x150] sm:$0xff]
        %v275 = vld [vmem:[%s190 + $0x158] sm:$0xff]
        %v276 = vld [vmem:[%s190 + $0x160] sm:$0xff]
        %v277 = vld [vmem:[%s190 + $0x168] sm:$0xff]
        %v278 = vld [vmem:[%s190 + $0x170] sm:$0xff]
        %v279 = vld [vmem:[%s190 + $0x178] sm:$0xff]
        %v280 = vld [vmem:[%s190 + $0x180] sm:$0xff]
        %v281 = vld [vmem:[%s190 + $0x188] sm:$0xff]
        %v282 = vld [vmem:[%s190 + $0x190] sm:$0xff]
        %v283 = vld [vmem:[%s190 + $0x198] sm:$0xff]
        %v284 = vld [vmem:[%s190 + $0x1a0] sm:$0xff]
        %v285 = vld [vmem:[%s190 + $0x1a8] sm:$0xff]
        %v286 = vld [vmem:[%s190 + $0x1b0] sm:$0xff]
        %v287 = vld [vmem:[%s190 + $0x1b8] sm:$0xff]
        %v288 = vld [vmem:[%s190 + $0x1c0] sm:$0xff]
        %v289 = vld [vmem:[%s190 + $0x1c8] sm:$0xff]
        %v290 = vld [vmem:[%s190 + $0x1d0] sm:$0xff]
        %v291 = vld [vmem:[%s190 + $0x1d8] sm:$0xff]
        %v292 = vld [vmem:[%s190 + $0x1e0] sm:$0xff]
        %v293 = vld [vmem:[%s190 + $0x1e8] sm:$0xff]
        %v294 = vld [vmem:[%s190 + $0x1f0] sm:$0xff]
        %v295 = vld [vmem:[%s190 + $0x1f8] sm:$0xff]
        %v296 = vld [vmem:[%s190 + $0x200] sm:$0xff]
        %v297 = vld [vmem:[%s190 + $0x208] sm:$0xff]
        %v298 = vld [vmem:[%s190 + $0x210] sm:$0xff]
        %v299 = vld [vmem:[%s190 + $0x218] sm:$0xff]
        %v300 = vld [vmem:[%s190 + $0x220] sm:$0xff]
        %v301 = vld [vmem:[%s190 + $0x228] sm:$0xff]
        %v302 = vld [vmem:[%s190 + $0x230] sm:$0xff]
        %v303 = vld [vmem:[%s190 + $0x238] sm:$0xff]
        %v304 = vld [vmem:[%s190 + $0x240] sm:$0xff]
        %v305 = vld [vmem:[%s190 + $0x248] sm:$0xff]
        %v306 = vld [vmem:[%s190 + $0x250] sm:$0xff]
        %v307 = vld [vmem:[%s190 + $0x258] sm:$0xff]
        %v308 = vld [vmem:[%s190 + $0x260] sm:$0xff]
        %v309 = vld [vmem:[%s190 + $0x268] sm:$0xff]
        %v310 = vld [vmem:[%s190 + $0x270] sm:$0xff]
        %v311 = vld [vmem:[%s190 + $0x278] sm:$0xff]
        %v312 = vld [vmem:[%s190 + $0x280] sm:$0xff]
        %v313 = vld [vmem:[%s190 + $0x288] sm:$0xff]
        %v314 = vld [vmem:[%s190 + $0x290] sm:$0xff]
        %v315 = vld [vmem:[%s190 + $0x298] sm:$0xff]
        %v316 = vld [vmem:[%s190 + $0x2a0] sm:$0xff]
        %v317 = vld [vmem:[%s190 + $0x2a8] sm:$0xff]
        %v318 = vld [vmem:[%s190 + $0x2b0] sm:$0xff]
        %v319 = vld [vmem:[%s190 + $0x2b8] sm:$0xff]
        %v320 = vld [vmem:[%s190 + $0x2c0] sm:$0xff]
        %v321 = vld [vmem:[%s190 + $0x2c8] sm:$0xff]
        %v322 = vld [vmem:[%s190 + $0x2d0] sm:$0xff]
        %v323 = vld [vmem:[%s190 + $0x2d8] sm:$0xff]
        %v324 = vld [vmem:[%s190 + $0x2e0] sm:$0xff]
        %v325 = vld [vmem:[%s190 + $0x2e8] sm:$0xff]
        %v326 = vld [vmem:[%s190 + $0x2f0] sm:$0xff]
        %v327 = vld [vmem:[%s190 + $0x2f8] sm:$0xff]
        %v328 = vld [vmem:[%s190 + $0x300] sm:$0xff]
        %v329 = vld [vmem:[%s190 + $0x308] sm:$0xff]
        %v330 = vld [vmem:[%s190 + $0x310] sm:$0xff]
        %v331 = vld [vmem:[%s190 + $0x318] sm:$0xff]
        %v332 = vld [vmem:[%s190 + $0x320] sm:$0xff]
        %v333 = vld [vmem:[%s190 + $0x328] sm:$0xff]
        %v334 = vld [vmem:[%s190 + $0x330] sm:$0xff]
        %v335 = vld [vmem:[%s190 + $0x338] sm:$0xff]
        %v336 = vld [vmem:[%s190 + $0x340] sm:$0xff]
        %v337 = vld [vmem:[%s190 + $0x348] sm:$0xff]
        %v338 = vld [vmem:[%s190 + $0x350] sm:$0xff]
        %v339 = vld [vmem:[%s190 + $0x358] sm:$0xff]
        %v340 = vld [vmem:[%s190 + $0x360] sm:$0xff]
        %v341 = vld [vmem:[%s190 + $0x368] sm:$0xff]
        %v342 = vld [vmem:[%s190 + $0x370] sm:$0xff]
        %v343 = vld [vmem:[%s190 + $0x378] sm:$0xff]
        %v344 = vld [vmem:[%s190 + $0x380] sm:$0xff]
        %v345 = vld [vmem:[%s190 + $0x388] sm:$0xff]
        %v346 = vld [vmem:[%s190 + $0x390] sm:$0xff]
        %v347 = vld [vmem:[%s190 + $0x398] sm:$0xff]
        %v348 = vld [vmem:[%s190 + $0x3a0] sm:$0xff]
        %v349 = vld [vmem:[%s190 + $0x3a8] sm:$0xff]
        %v350 = vld [vmem:[%s190 + $0x3b0] sm:$0xff]
        %v351 = vld [vmem:[%s190 + $0x3b8] sm:$0xff]
        %v352 = vld [vmem:[%s190 + $0x3c0] sm:$0xff]
        %v353 = vld [vmem:[%s190 + $0x3c8] sm:$0xff]
        %v354 = vld [vmem:[%s190 + $0x3d0] sm:$0xff]
        %v355 = vld [vmem:[%s190 + $0x3d8] sm:$0xff]
        %v356 = vld [vmem:[%s190 + $0x3e0] sm:$0xff]
        %v357 = vld [vmem:[%s190 + $0x3e8] sm:$0xff]
        %v358 = vld [vmem:[%s190 + $0x3f0] sm:$0xff]
        %v359 = vld [vmem:[%s190 + $0x3f8] sm:$0xff]
        %v360 = vadd.f32 %v232, %v236
        %v361 = vadd.f32 %v360, %v240
        %v362 = vadd.f32 %v361, %v244
        %v363 = vadd.f32 %v362, %v248
        %v364 = vadd.f32 %v363, %v252
        %v365 = vadd.f32 %v364, %v256
        %v366 = vadd.f32 %v365, %v260
        %v367 = vadd.f32 %v366, %v264
        %v368 = vadd.f32 %v367, %v268
        %v369 = vadd.f32 %v368, %v272
        %v370 = vadd.f32 %v369, %v276
        %v371 = vadd.f32 %v370, %v280
        %v372 = vadd.f32 %v371, %v284
        %v373 = vadd.f32 %v372, %v288
        %v374 = vadd.f32 %v373, %v292
        %v375 = vadd.f32 %v374, %v296
        %v376 = vadd.f32 %v375, %v300
        %v377 = vadd.f32 %v376, %v304
        %v378 = vadd.f32 %v377, %v308
        %v379 = vadd.f32 %v378, %v312
        %v380 = vadd.f32 %v379, %v316
        %v381 = vadd.f32 %v380, %v320
        %v382 = vadd.f32 %v381, %v324
        %v383 = vadd.f32 %v382, %v328
        %v384 = vadd.f32 %v383, %v332
        %v385 = vadd.f32 %v384, %v336
        %v386 = vadd.f32 %v385, %v340
        %v387 = vadd.f32 %v386, %v344
        %v388 = vadd.f32 %v387, %v348
        %v389 = vadd.f32 %v388, %v352
        %v390 = vadd.f32 %v389, %v356
        %v391 = vrot.slane %v390, 4
        %v392 = vadd.f32 %v390, %v391
        %v393 = vrot.slane %v392, 2
        %v394 = vadd.f32 %v392, %v393
        %v395 = vrot.slane %v394, 1
        %v396 = vadd.f32 %v394, %v395
        %v397 = vadd.f32 %v233, %v237
        %v398 = vadd.f32 %v397, %v241
        %v399 = vadd.f32 %v398, %v245
        %v400 = vadd.f32 %v399, %v249
        %v401 = vadd.f32 %v400, %v253
        %v402 = vadd.f32 %v401, %v257
        %v403 = vadd.f32 %v402, %v261
        %v404 = vadd.f32 %v403, %v265
        %v405 = vadd.f32 %v404, %v269
        %v406 = vadd.f32 %v405, %v273
        %v407 = vadd.f32 %v406, %v277
        %v408 = vadd.f32 %v407, %v281
        %v409 = vadd.f32 %v408, %v285
        %v410 = vadd.f32 %v409, %v289
        %v411 = vadd.f32 %v410, %v293
        %v412 = vadd.f32 %v411, %v297
        %v413 = vadd.f32 %v412, %v301
        %v414 = vadd.f32 %v413, %v305
        %v415 = vadd.f32 %v414, %v309
        %v416 = vadd.f32 %v415, %v313
        %v417 = vadd.f32 %v416, %v317
        %v418 = vadd.f32 %v417, %v321
        %v419 = vadd.f32 %v418, %v325
        %v420 = vadd.f32 %v419, %v329
        %v421 = vadd.f32 %v420, %v333
        %v422 = vadd.f32 %v421, %v337
        %v423 = vadd.f32 %v422, %v341
        %v424 = vadd.f32 %v423, %v345
        %v425 = vadd.f32 %v424, %v349
        %v426 = vadd.f32 %v425, %v353
        %v427 = vadd.f32 %v426, %v357
        %v428 = vrot.slane %v427, 4
        %v429 = vadd.f32 %v427, %v428
        %v430 = vrot.slane %v429, 2
        %v431 = vadd.f32 %v429, %v430
        %v432 = vrot.slane %v431, 1
        %v433 = vadd.f32 %v431, %v432
        %v434 = vadd.f32 %v234, %v238
        %v435 = vadd.f32 %v434, %v242
        %v436 = vadd.f32 %v435, %v246
        %v437 = vadd.f32 %v436, %v250
        %v438 = vadd.f32 %v437, %v254
        %v439 = vadd.f32 %v438, %v258
        %v440 = vadd.f32 %v439, %v262
        %v441 = vadd.f32 %v440, %v266
        %v442 = vadd.f32 %v441, %v270
        %v443 = vadd.f32 %v442, %v274
        %v444 = vadd.f32 %v443, %v278
        %v445 = vadd.f32 %v444, %v282
        %v446 = vadd.f32 %v445, %v286
        %v447 = vadd.f32 %v446, %v290
        %v448 = vadd.f32 %v447, %v294
        %v449 = vadd.f32 %v448, %v298
        %v450 = vadd.f32 %v449, %v302
        %v451 = vadd.f32 %v450, %v306
        %v452 = vadd.f32 %v451, %v310
        %v453 = vadd.f32 %v452, %v314
        %v454 = vadd.f32 %v453, %v318
        %v455 = vadd.f32 %v454, %v322
        %v456 = vadd.f32 %v455, %v326
        %v457 = vadd.f32 %v456, %v330
        %v458 = vadd.f32 %v457, %v334
        %v459 = vadd.f32 %v458, %v338
        %v460 = vadd.f32 %v459, %v342
        %v461 = vadd.f32 %v460, %v346
        %v462 = vadd.f32 %v461, %v350
        %v463 = vadd.f32 %v462, %v354
        %v464 = vadd.f32 %v463, %v358
        %v465 = vrot.slane %v464, 4
        %v466 = vadd.f32 %v464, %v465
        %v467 = vrot.slane %v466, 2
        %v468 = vadd.f32 %v466, %v467
        %v469 = vrot.slane %v468, 1
        %v470 = vadd.f32 %v468, %v469
        %v471 = vadd.f32 %v235, %v239
        %v472 = vadd.f32 %v471, %v243
        %v473 = vadd.f32 %v472, %v247
        %v474 = vadd.f32 %v473, %v251
        %v475 = vadd.f32 %v474, %v255
        %v476 = vadd.f32 %v475, %v259
        %v477 = vadd.f32 %v476, %v263
        %v478 = vadd.f32 %v477, %v267
        %v479 = vadd.f32 %v478, %v271
        %v480 = vadd.f32 %v479, %v275
        %v481 = vadd.f32 %v480, %v279
        %v482 = vadd.f32 %v481, %v283
        %v483 = vadd.f32 %v482, %v287
        %v484 = vadd.f32 %v483, %v291
        %v485 = vadd.f32 %v484, %v295
        %v486 = vadd.f32 %v485, %v299
        %v487 = vadd.f32 %v486, %v303
        %v488 = vadd.f32 %v487, %v307
        %v489 = vadd.f32 %v488, %v311
        %v490 = vadd.f32 %v489, %v315
        %v491 = vadd.f32 %v490, %v319
        %v492 = vadd.f32 %v491, %v323
        %v493 = vadd.f32 %v492, %v327
        %v494 = vadd.f32 %v493, %v331
        %v495 = vadd.f32 %v494, %v335
        %v496 = vadd.f32 %v495, %v339
        %v497 = vadd.f32 %v496, %v343
        %v498 = vadd.f32 %v497, %v347
        %v499 = vadd.f32 %v498, %v351
        %v500 = vadd.f32 %v499, %v355
        %v501 = vadd.f32 %v500, %v359
        %v502 = vrot.slane %v501, 4
        %v503 = vadd.f32 %v501, %v502
        %v504 = vrot.slane %v503, 2
        %v505 = vadd.f32 %v503, %v504
        %v506 = vrot.slane %v505, 1
        %v507 = vadd.f32 %v505, %v506
        %v508 = vld [vmem:[%s199] sm:$0xff]
        %v509 = vld [vmem:[%s199 + $0x8] sm:$0xff]
        %v510 = vld [vmem:[%s199 + $0x10] sm:$0xff]
        %v511 = vld [vmem:[%s199 + $0x18] sm:$0xff]
        %v512 = vld [vmem:[%s199 + $0x20] sm:$0xff]
        %v513 = vld [vmem:[%s199 + $0x28] sm:$0xff]
        %v514 = vld [vmem:[%s199 + $0x30] sm:$0xff]
        %v515 = vld [vmem:[%s199 + $0x38] sm:$0xff]
        %v516 = vld [vmem:[%s199 + $0x40] sm:$0xff]
        %v517 = vld [vmem:[%s199 + $0x48] sm:$0xff]
        %v518 = vld [vmem:[%s199 + $0x50] sm:$0xff]
        %v519 = vld [vmem:[%s199 + $0x58] sm:$0xff]
        %v520 = vld [vmem:[%s199 + $0x60] sm:$0xff]
        %v521 = vld [vmem:[%s199 + $0x68] sm:$0xff]
        %v522 = vld [vmem:[%s199 + $0x70] sm:$0xff]
        %v523 = vld [vmem:[%s199 + $0x78] sm:$0xff]
        %v524 = vld [vmem:[%s199 + $0x80] sm:$0xff]
        %v525 = vld [vmem:[%s199 + $0x88] sm:$0xff]
        %v526 = vld [vmem:[%s199 + $0x90] sm:$0xff]
        %v527 = vld [vmem:[%s199 + $0x98] sm:$0xff]
        %v528 = vld [vmem:[%s199 + $0xa0] sm:$0xff]
        %v529 = vld [vmem:[%s199 + $0xa8] sm:$0xff]
        %v530 = vld [vmem:[%s199 + $0xb0] sm:$0xff]
        %v531 = vld [vmem:[%s199 + $0xb8] sm:$0xff]
        %v532 = vld [vmem:[%s199 + $0xc0] sm:$0xff]
        %v533 = vld [vmem:[%s199 + $0xc8] sm:$0xff]
        %v534 = vld [vmem:[%s199 + $0xd0] sm:$0xff]
        %v535 = vld [vmem:[%s199 + $0xd8] sm:$0xff]
        %v536 = vld [vmem:[%s199 + $0xe0] sm:$0xff]
        %v537 = vld [vmem:[%s199 + $0xe8] sm:$0xff]
        %v538 = vld [vmem:[%s199 + $0xf0] sm:$0xff]
        %v539 = vld [vmem:[%s199 + $0xf8] sm:$0xff]
        %v540 = vld [vmem:[%s199 + $0x100] sm:$0xff]
        %v541 = vld [vmem:[%s199 + $0x108] sm:$0xff]
        %v542 = vld [vmem:[%s199 + $0x110] sm:$0xff]
        %v543 = vld [vmem:[%s199 + $0x118] sm:$0xff]
        %v544 = vld [vmem:[%s199 + $0x120] sm:$0xff]
        %v545 = vld [vmem:[%s199 + $0x128] sm:$0xff]
        %v546 = vld [vmem:[%s199 + $0x130] sm:$0xff]
        %v547 = vld [vmem:[%s199 + $0x138] sm:$0xff]
        %v548 = vld [vmem:[%s199 + $0x140] sm:$0xff]
        %v549 = vld [vmem:[%s199 + $0x148] sm:$0xff]
        %v550 = vld [vmem:[%s199 + $0x150] sm:$0xff]
        %v551 = vld [vmem:[%s199 + $0x158] sm:$0xff]
        %v552 = vld [vmem:[%s199 + $0x160] sm:$0xff]
        %v553 = vld [vmem:[%s199 + $0x168] sm:$0xff]
        %v554 = vld [vmem:[%s199 + $0x170] sm:$0xff]
        %v555 = vld [vmem:[%s199 + $0x178] sm:$0xff]
        %v556 = vld [vmem:[%s199 + $0x180] sm:$0xff]
        %v557 = vld [vmem:[%s199 + $0x188] sm:$0xff]
        %v558 = vld [vmem:[%s199 + $0x190] sm:$0xff]
        %v559 = vld [vmem:[%s199 + $0x198] sm:$0xff]
        %v560 = vld [vmem:[%s199 + $0x1a0] sm:$0xff]
        %v561 = vld [vmem:[%s199 + $0x1a8] sm:$0xff]
        %v562 = vld [vmem:[%s199 + $0x1b0] sm:$0xff]
        %v563 = vld [vmem:[%s199 + $0x1b8] sm:$0xff]
        %v564 = vld [vmem:[%s199 + $0x1c0] sm:$0xff]
        %v565 = vld [vmem:[%s199 + $0x1c8] sm:$0xff]
        %v566 = vld [vmem:[%s199 + $0x1d0] sm:$0xff]
        %v567 = vld [vmem:[%s199 + $0x1d8] sm:$0xff]
        %v568 = vld [vmem:[%s199 + $0x1e0] sm:$0xff]
        %v569 = vld [vmem:[%s199 + $0x1e8] sm:$0xff]
        %v570 = vld [vmem:[%s199 + $0x1f0] sm:$0xff]
        %v571 = vld [vmem:[%s199 + $0x1f8] sm:$0xff]
        %v572 = vld [vmem:[%s199 + $0x200] sm:$0xff]
        %v573 = vld [vmem:[%s199 + $0x208] sm:$0xff]
        %v574 = vld [vmem:[%s199 + $0x210] sm:$0xff]
        %v575 = vld [vmem:[%s199 + $0x218] sm:$0xff]
        %v576 = vld [vmem:[%s199 + $0x220] sm:$0xff]
        %v577 = vld [vmem:[%s199 + $0x228] sm:$0xff]
        %v578 = vld [vmem:[%s199 + $0x230] sm:$0xff]
        %v579 = vld [vmem:[%s199 + $0x238] sm:$0xff]
        %v580 = vld [vmem:[%s199 + $0x240] sm:$0xff]
        %v581 = vld [vmem:[%s199 + $0x248] sm:$0xff]
        %v582 = vld [vmem:[%s199 + $0x250] sm:$0xff]
        %v583 = vld [vmem:[%s199 + $0x258] sm:$0xff]
        %v584 = vld [vmem:[%s199 + $0x260] sm:$0xff]
        %v585 = vld [vmem:[%s199 + $0x268] sm:$0xff]
        %v586 = vld [vmem:[%s199 + $0x270] sm:$0xff]
        %v587 = vld [vmem:[%s199 + $0x278] sm:$0xff]
        %v588 = vld [vmem:[%s199 + $0x280] sm:$0xff]
        %v589 = vld [vmem:[%s199 + $0x288] sm:$0xff]
        %v590 = vld [vmem:[%s199 + $0x290] sm:$0xff]
        %v591 = vld [vmem:[%s199 + $0x298] sm:$0xff]
        %v592 = vld [vmem:[%s199 + $0x2a0] sm:$0xff]
        %v593 = vld [vmem:[%s199 + $0x2a8] sm:$0xff]
        %v594 = vld [vmem:[%s199 + $0x2b0] sm:$0xff]
        %v595 = vld [vmem:[%s199 + $0x2b8] sm:$0xff]
        %v596 = vld [vmem:[%s199 + $0x2c0] sm:$0xff]
        %v597 = vld [vmem:[%s199 + $0x2c8] sm:$0xff]
        %v598 = vld [vmem:[%s199 + $0x2d0] sm:$0xff]
        %v599 = vld [vmem:[%s199 + $0x2d8] sm:$0xff]
        %v600 = vld [vmem:[%s199 + $0x2e0] sm:$0xff]
        %v601 = vld [vmem:[%s199 + $0x2e8] sm:$0xff]
        %v602 = vld [vmem:[%s199 + $0x2f0] sm:$0xff]
        %v603 = vld [vmem:[%s199 + $0x2f8] sm:$0xff]
        %v604 = vld [vmem:[%s199 + $0x300] sm:$0xff]
        %v605 = vld [vmem:[%s199 + $0x308] sm:$0xff]
        %v606 = vld [vmem:[%s199 + $0x310] sm:$0xff]
        %v607 = vld [vmem:[%s199 + $0x318] sm:$0xff]
        %v608 = vld [vmem:[%s199 + $0x320] sm:$0xff]
        %v609 = vld [vmem:[%s199 + $0x328] sm:$0xff]
        %v610 = vld [vmem:[%s199 + $0x330] sm:$0xff]
        %v611 = vld [vmem:[%s199 + $0x338] sm:$0xff]
        %v612 = vld [vmem:[%s199 + $0x340] sm:$0xff]
        %v613 = vld [vmem:[%s199 + $0x348] sm:$0xff]
        %v614 = vld [vmem:[%s199 + $0x350] sm:$0xff]
        %v615 = vld [vmem:[%s199 + $0x358] sm:$0xff]
        %v616 = vld [vmem:[%s199 + $0x360] sm:$0xff]
        %v617 = vld [vmem:[%s199 + $0x368] sm:$0xff]
        %v618 = vld [vmem:[%s199 + $0x370] sm:$0xff]
        %v619 = vld [vmem:[%s199 + $0x378] sm:$0xff]
        %v620 = vld [vmem:[%s199 + $0x380] sm:$0xff]
        %v621 = vld [vmem:[%s199 + $0x388] sm:$0xff]
        %v622 = vld [vmem:[%s199 + $0x390] sm:$0xff]
        %v623 = vld [vmem:[%s199 + $0x398] sm:$0xff]
        %v624 = vld [vmem:[%s199 + $0x3a0] sm:$0xff]
        %v625 = vld [vmem:[%s199 + $0x3a8] sm:$0xff]
        %v626 = vld [vmem:[%s199 + $0x3b0] sm:$0xff]
        %v627 = vld [vmem:[%s199 + $0x3b8] sm:$0xff]
        %v628 = vld [vmem:[%s199 + $0x3c0] sm:$0xff]
        %v629 = vld [vmem:[%s199 + $0x3c8] sm:$0xff]
        %v630 = vld [vmem:[%s199 + $0x3d0] sm:$0xff]
        %v631 = vld [vmem:[%s199 + $0x3d8] sm:$0xff]
        %v632 = vld [vmem:[%s199 + $0x3e0] sm:$0xff]
        %v633 = vld [vmem:[%s199 + $0x3e8] sm:$0xff]
        %v634 = vld [vmem:[%s199 + $0x3f0] sm:$0xff]
        %v635 = vld [vmem:[%s199 + $0x3f8] sm:$0xff]
        %v636 = vld [vmem:[%s199 + $0x400] sm:$0xff]
        %v637 = vld [vmem:[%s199 + $0x408] sm:$0xff]
        %v638 = vld [vmem:[%s199 + $0x410] sm:$0xff]
        %v639 = vld [vmem:[%s199 + $0x418] sm:$0xff]
        %v640 = vld [vmem:[%s199 + $0x420] sm:$0xff]
        %v641 = vld [vmem:[%s199 + $0x428] sm:$0xff]
        %v642 = vld [vmem:[%s199 + $0x430] sm:$0xff]
        %v643 = vld [vmem:[%s199 + $0x438] sm:$0xff]
        %v644 = vld [vmem:[%s199 + $0x440] sm:$0xff]
        %v645 = vld [vmem:[%s199 + $0x448] sm:$0xff]
        %v646 = vld [vmem:[%s199 + $0x450] sm:$0xff]
        %v647 = vld [vmem:[%s199 + $0x458] sm:$0xff]
        %v648 = vld [vmem:[%s199 + $0x460] sm:$0xff]
        %v649 = vld [vmem:[%s199 + $0x468] sm:$0xff]
        %v650 = vld [vmem:[%s199 + $0x470] sm:$0xff]
        %v651 = vld [vmem:[%s199 + $0x478] sm:$0xff]
        %v652 = vld [vmem:[%s199 + $0x480] sm:$0xff]
        %v653 = vld [vmem:[%s199 + $0x488] sm:$0xff]
        %v654 = vld [vmem:[%s199 + $0x490] sm:$0xff]
        %v655 = vld [vmem:[%s199 + $0x498] sm:$0xff]
        %v656 = vld [vmem:[%s199 + $0x4a0] sm:$0xff]
        %v657 = vld [vmem:[%s199 + $0x4a8] sm:$0xff]
        %v658 = vld [vmem:[%s199 + $0x4b0] sm:$0xff]
        %v659 = vld [vmem:[%s199 + $0x4b8] sm:$0xff]
        %v660 = vld [vmem:[%s199 + $0x4c0] sm:$0xff]
        %v661 = vld [vmem:[%s199 + $0x4c8] sm:$0xff]
        %v662 = vld [vmem:[%s199 + $0x4d0] sm:$0xff]
        %v663 = vld [vmem:[%s199 + $0x4d8] sm:$0xff]
        %v664 = vld [vmem:[%s199 + $0x4e0] sm:$0xff]
        %v665 = vld [vmem:[%s199 + $0x4e8] sm:$0xff]
        %v666 = vld [vmem:[%s199 + $0x4f0] sm:$0xff]
        %v667 = vld [vmem:[%s199 + $0x4f8] sm:$0xff]
        %v668 = vld [vmem:[%s199 + $0x500] sm:$0xff]
        %v669 = vld [vmem:[%s199 + $0x508] sm:$0xff]
        %v670 = vld [vmem:[%s199 + $0x510] sm:$0xff]
        %v671 = vld [vmem:[%s199 + $0x518] sm:$0xff]
        %v672 = vld [vmem:[%s199 + $0x520] sm:$0xff]
        %v673 = vld [vmem:[%s199 + $0x528] sm:$0xff]
        %v674 = vld [vmem:[%s199 + $0x530] sm:$0xff]
        %v675 = vld [vmem:[%s199 + $0x538] sm:$0xff]
        %v676 = vld [vmem:[%s199 + $0x540] sm:$0xff]
        %v677 = vld [vmem:[%s199 + $0x548] sm:$0xff]
        %v678 = vld [vmem:[%s199 + $0x550] sm:$0xff]
        %v679 = vld [vmem:[%s199 + $0x558] sm:$0xff]
        %v680 = vld [vmem:[%s199 + $0x560] sm:$0xff]
        %v681 = vld [vmem:[%s199 + $0x568] sm:$0xff]
        %v682 = vld [vmem:[%s199 + $0x570] sm:$0xff]
        %v683 = vld [vmem:[%s199 + $0x578] sm:$0xff]
        %v684 = vld [vmem:[%s199 + $0x580] sm:$0xff]
        %v685 = vld [vmem:[%s199 + $0x588] sm:$0xff]
        %v686 = vld [vmem:[%s199 + $0x590] sm:$0xff]
        %v687 = vld [vmem:[%s199 + $0x598] sm:$0xff]
        %v688 = vld [vmem:[%s199 + $0x5a0] sm:$0xff]
        %v689 = vld [vmem:[%s199 + $0x5a8] sm:$0xff]
        %v690 = vld [vmem:[%s199 + $0x5b0] sm:$0xff]
        %v691 = vld [vmem:[%s199 + $0x5b8] sm:$0xff]
        %v692 = vld [vmem:[%s199 + $0x5c0] sm:$0xff]
        %v693 = vld [vmem:[%s199 + $0x5c8] sm:$0xff]
        %v694 = vld [vmem:[%s199 + $0x5d0] sm:$0xff]
        %v695 = vld [vmem:[%s199 + $0x5d8] sm:$0xff]
        %v696 = vld [vmem:[%s199 + $0x5e0] sm:$0xff]
        %v697 = vld [vmem:[%s199 + $0x5e8] sm:$0xff]
        %v698 = vld [vmem:[%s199 + $0x5f0] sm:$0xff]
        %v699 = vld [vmem:[%s199 + $0x5f8] sm:$0xff]
        %v700 = vld [vmem:[%s199 + $0x600] sm:$0xff]
        %v701 = vld [vmem:[%s199 + $0x608] sm:$0xff]
        %v702 = vld [vmem:[%s199 + $0x610] sm:$0xff]
        %v703 = vld [vmem:[%s199 + $0x618] sm:$0xff]
        %v704 = vld [vmem:[%s199 + $0x620] sm:$0xff]
        %v705 = vld [vmem:[%s199 + $0x628] sm:$0xff]
        %v706 = vld [vmem:[%s199 + $0x630] sm:$0xff]
        %v707 = vld [vmem:[%s199 + $0x638] sm:$0xff]
        %v708 = vld [vmem:[%s199 + $0x640] sm:$0xff]
        %v709 = vld [vmem:[%s199 + $0x648] sm:$0xff]
        %v710 = vld [vmem:[%s199 + $0x650] sm:$0xff]
        %v711 = vld [vmem:[%s199 + $0x658] sm:$0xff]
        %v712 = vld [vmem:[%s199 + $0x660] sm:$0xff]
        %v713 = vld [vmem:[%s199 + $0x668] sm:$0xff]
        %v714 = vld [vmem:[%s199 + $0x670] sm:$0xff]
        %v715 = vld [vmem:[%s199 + $0x678] sm:$0xff]
        %v716 = vld [vmem:[%s199 + $0x680] sm:$0xff]
        %v717 = vld [vmem:[%s199 + $0x688] sm:$0xff]
        %v718 = vld [vmem:[%s199 + $0x690] sm:$0xff]
        %v719 = vld [vmem:[%s199 + $0x698] sm:$0xff]
        %v720 = vld [vmem:[%s199 + $0x6a0] sm:$0xff]
        %v721 = vld [vmem:[%s199 + $0x6a8] sm:$0xff]
        %v722 = vld [vmem:[%s199 + $0x6b0] sm:$0xff]
        %v723 = vld [vmem:[%s199 + $0x6b8] sm:$0xff]
        %v724 = vld [vmem:[%s199 + $0x6c0] sm:$0xff]
        %v725 = vld [vmem:[%s199 + $0x6c8] sm:$0xff]
        %v726 = vld [vmem:[%s199 + $0x6d0] sm:$0xff]
        %v727 = vld [vmem:[%s199 + $0x6d8] sm:$0xff]
        %v728 = vld [vmem:[%s199 + $0x6e0] sm:$0xff]
        %v729 = vld [vmem:[%s199 + $0x6e8] sm:$0xff]
        %v730 = vld [vmem:[%s199 + $0x6f0] sm:$0xff]
        %v731 = vld [vmem:[%s199 + $0x6f8] sm:$0xff]
        %v732 = vld [vmem:[%s199 + $0x700] sm:$0xff]
        %v733 = vld [vmem:[%s199 + $0x708] sm:$0xff]
        %v734 = vld [vmem:[%s199 + $0x710] sm:$0xff]
        %v735 = vld [vmem:[%s199 + $0x718] sm:$0xff]
        %v736 = vld [vmem:[%s199 + $0x720] sm:$0xff]
        %v737 = vld [vmem:[%s199 + $0x728] sm:$0xff]
        %v738 = vld [vmem:[%s199 + $0x730] sm:$0xff]
        %v739 = vld [vmem:[%s199 + $0x738] sm:$0xff]
        %v740 = vld [vmem:[%s199 + $0x740] sm:$0xff]
        %v741 = vld [vmem:[%s199 + $0x748] sm:$0xff]
        %v742 = vld [vmem:[%s199 + $0x750] sm:$0xff]
        %v743 = vld [vmem:[%s199 + $0x758] sm:$0xff]
        %v744 = vld [vmem:[%s199 + $0x760] sm:$0xff]
        %v745 = vld [vmem:[%s199 + $0x768] sm:$0xff]
        %v746 = vld [vmem:[%s199 + $0x770] sm:$0xff]
        %v747 = vld [vmem:[%s199 + $0x778] sm:$0xff]
        %v748 = vld [vmem:[%s199 + $0x780] sm:$0xff]
        %v749 = vld [vmem:[%s199 + $0x788] sm:$0xff]
        %v750 = vld [vmem:[%s199 + $0x790] sm:$0xff]
        %v751 = vld [vmem:[%s199 + $0x798] sm:$0xff]
        %v752 = vld [vmem:[%s199 + $0x7a0] sm:$0xff]
        %v753 = vld [vmem:[%s199 + $0x7a8] sm:$0xff]
        %v754 = vld [vmem:[%s199 + $0x7b0] sm:$0xff]
        %v755 = vld [vmem:[%s199 + $0x7b8] sm:$0xff]
        %v756 = vld [vmem:[%s199 + $0x7c0] sm:$0xff]
        %v757 = vld [vmem:[%s199 + $0x7c8] sm:$0xff]
        %v758 = vld [vmem:[%s199 + $0x7d0] sm:$0xff]
        %v759 = vld [vmem:[%s199 + $0x7d8] sm:$0xff]
        %v760 = vld [vmem:[%s199 + $0x7e0] sm:$0xff]
        %v761 = vld [vmem:[%s199 + $0x7e8] sm:$0xff]
        %v762 = vld [vmem:[%s199 + $0x7f0] sm:$0xff]
        %v763 = vld [vmem:[%s199 + $0x7f8] sm:$0xff]
        %v764 = vadd.f32 %v508, %v509
        %v765 = vadd.f32 %v764, %v510
        %v766 = vadd.f32 %v765, %v511
        %767 = vadd.xlane.f32.xlu0 %v766
        %v768 = vpop.xlane.xlu0 %767
        %v769 = vadd.f32 %v512, %v513
        %v770 = vadd.f32 %v769, %v514
        %v771 = vadd.f32 %v770, %v515
        %772 = vadd.xlane.f32.xlu0 %v771
        %v773 = vpop.xlane.xlu0 %772
        %v774 = vadd.f32 %v516, %v517
        %v775 = vadd.f32 %v774, %v518
        %v776 = vadd.f32 %v775, %v519
        %777 = vadd.xlane.f32.xlu0 %v776
        %v778 = vpop.xlane.xlu0 %777
        %v779 = vadd.f32 %v520, %v521
        %v780 = vadd.f32 %v779, %v522
        %v781 = vadd.f32 %v780, %v523
        %782 = vadd.xlane.f32.xlu0 %v781
        %v783 = vpop.xlane.xlu0 %782
        %v784 = vadd.f32 %v524, %v525
        %v785 = vadd.f32 %v784, %v526
        %v786 = vadd.f32 %v785, %v527
        %787 = vadd.xlane.f32.xlu0 %v786
        %v788 = vpop.xlane.xlu0 %787
        %v789 = vadd.f32 %v528, %v529
        %v790 = vadd.f32 %v789, %v530
        %v791 = vadd.f32 %v790, %v531
        %792 = vadd.xlane.f32.xlu0 %v791
        %v793 = vpop.xlane.xlu0 %792
        %v794 = vadd.f32 %v532, %v533
        %v795 = vadd.f32 %v794, %v534
        %v796 = vadd.f32 %v795, %v535
        %797 = vadd.xlane.f32.xlu0 %v796
        %v798 = vpop.xlane.xlu0 %797
        %v799 = vadd.f32 %v536, %v537
        %v800 = vadd.f32 %v799, %v538
        %v801 = vadd.f32 %v800, %v539
        %802 = vadd.xlane.f32.xlu0 %v801
        %v803 = vpop.xlane.xlu0 %802
        %v804 = vadd.f32 %v540, %v541
        %v805 = vadd.f32 %v804, %v542
        %v806 = vadd.f32 %v805, %v543
        %807 = vadd.xlane.f32.xlu0 %v806
        %v808 = vpop.xlane.xlu0 %807
        %v809 = vadd.f32 %v544, %v545
        %v810 = vadd.f32 %v809, %v546
        %v811 = vadd.f32 %v810, %v547
        %812 = vadd.xlane.f32.xlu0 %v811
        %v813 = vpop.xlane.xlu0 %812
        %v814 = vadd.f32 %v548, %v549
        %v815 = vadd.f32 %v814, %v550
        %v816 = vadd.f32 %v815, %v551
        %817 = vadd.xlane.f32.xlu0 %v816
        %v818 = vpop.xlane.xlu0 %817
        %v819 = vadd.f32 %v552, %v553
        %v820 = vadd.f32 %v819, %v554
        %v821 = vadd.f32 %v820, %v555
        %822 = vadd.xlane.f32.xlu0 %v821
        %v823 = vpop.xlane.xlu0 %822
        %v824 = vadd.f32 %v556, %v557
        %v825 = vadd.f32 %v824, %v558
        %v826 = vadd.f32 %v825, %v559
        %827 = vadd.xlane.f32.xlu0 %v826
        %v828 = vpop.xlane.xlu0 %827
        %v829 = vadd.f32 %v560, %v561
        %v830 = vadd.f32 %v829, %v562
        %v831 = vadd.f32 %v830, %v563
        %832 = vadd.xlane.f32.xlu0 %v831
        %v833 = vpop.xlane.xlu0 %832
        %v834 = vadd.f32 %v564, %v565
        %v835 = vadd.f32 %v834, %v566
        %v836 = vadd.f32 %v835, %v567
        %837 = vadd.xlane.f32.xlu0 %v836
        %v838 = vpop.xlane.xlu0 %837
        %v839 = vadd.f32 %v568, %v569
        %v840 = vadd.f32 %v839, %v570
        %v841 = vadd.f32 %v840, %v571
        %842 = vadd.xlane.f32.xlu0 %v841
        %v843 = vpop.xlane.xlu0 %842
        %v844 = vadd.f32 %v572, %v573
        %v845 = vadd.f32 %v844, %v574
        %v846 = vadd.f32 %v845, %v575
        %847 = vadd.xlane.f32.xlu0 %v846
        %v848 = vpop.xlane.xlu0 %847
        %v849 = vadd.f32 %v576, %v577
        %v850 = vadd.f32 %v849, %v578
        %v851 = vadd.f32 %v850, %v579
        %852 = vadd.xlane.f32.xlu0 %v851
        %v853 = vpop.xlane.xlu0 %852
        %v854 = vadd.f32 %v580, %v581
        %v855 = vadd.f32 %v854, %v582
        %v856 = vadd.f32 %v855, %v583
        %857 = vadd.xlane.f32.xlu0 %v856
        %v858 = vpop.xlane.xlu0 %857
        %v859 = vadd.f32 %v584, %v585
        %v860 = vadd.f32 %v859, %v586
        %v861 = vadd.f32 %v860, %v587
        %862 = vadd.xlane.f32.xlu0 %v861
        %v863 = vpop.xlane.xlu0 %862
        %v864 = vadd.f32 %v588, %v589
        %v865 = vadd.f32 %v864, %v590
        %v866 = vadd.f32 %v865, %v591
        %867 = vadd.xlane.f32.xlu0 %v866
        %v868 = vpop.xlane.xlu0 %867
        %v869 = vadd.f32 %v592, %v593
        %v870 = vadd.f32 %v869, %v594
        %v871 = vadd.f32 %v870, %v595
        %872 = vadd.xlane.f32.xlu0 %v871
        %v873 = vpop.xlane.xlu0 %872
        %v874 = vadd.f32 %v596, %v597
        %v875 = vadd.f32 %v874, %v598
        %v876 = vadd.f32 %v875, %v599
        %877 = vadd.xlane.f32.xlu0 %v876
        %v878 = vpop.xlane.xlu0 %877
        %v879 = vadd.f32 %v600, %v601
        %v880 = vadd.f32 %v879, %v602
        %v881 = vadd.f32 %v880, %v603
        %882 = vadd.xlane.f32.xlu0 %v881
        %v883 = vpop.xlane.xlu0 %882
        %v884 = vadd.f32 %v604, %v605
        %v885 = vadd.f32 %v884, %v606
        %v886 = vadd.f32 %v885, %v607
        %887 = vadd.xlane.f32.xlu0 %v886
        %v888 = vpop.xlane.xlu0 %887
        %v889 = vadd.f32 %v608, %v609
        %v890 = vadd.f32 %v889, %v610
        %v891 = vadd.f32 %v890, %v611
        %892 = vadd.xlane.f32.xlu0 %v891
        %v893 = vpop.xlane.xlu0 %892
        %v894 = vadd.f32 %v612, %v613
        %v895 = vadd.f32 %v894, %v614
        %v896 = vadd.f32 %v895, %v615
        %897 = vadd.xlane.f32.xlu0 %v896
        %v898 = vpop.xlane.xlu0 %897
        %v899 = vadd.f32 %v616, %v617
        %v900 = vadd.f32 %v899, %v618
        %v901 = vadd.f32 %v900, %v619
        %902 = vadd.xlane.f32.xlu0 %v901
        %v903 = vpop.xlane.xlu0 %902
        %v904 = vadd.f32 %v620, %v621
        %v905 = vadd.f32 %v904, %v622
        %v906 = vadd.f32 %v905, %v623
        %907 = vadd.xlane.f32.xlu0 %v906
        %v908 = vpop.xlane.xlu0 %907
        %v909 = vadd.f32 %v624, %v625
        %v910 = vadd.f32 %v909, %v626
        %v911 = vadd.f32 %v910, %v627
        %912 = vadd.xlane.f32.xlu0 %v911
        %v913 = vpop.xlane.xlu0 %912
        %v914 = vadd.f32 %v628, %v629
        %v915 = vadd.f32 %v914, %v630
        %v916 = vadd.f32 %v915, %v631
        %917 = vadd.xlane.f32.xlu0 %v916
        %v918 = vpop.xlane.xlu0 %917
        %v919 = vadd.f32 %v632, %v633
        %v920 = vadd.f32 %v919, %v634
        %v921 = vadd.f32 %v920, %v635
        %922 = vadd.xlane.f32.xlu0 %v921
        %v923 = vpop.xlane.xlu0 %922
        %v924 = vadd.f32 %v636, %v637
        %v925 = vadd.f32 %v924, %v638
        %v926 = vadd.f32 %v925, %v639
        %927 = vadd.xlane.f32.xlu0 %v926
        %v928 = vpop.xlane.xlu0 %927
        %v929 = vadd.f32 %v640, %v641
        %v930 = vadd.f32 %v929, %v642
        %v931 = vadd.f32 %v930, %v643
        %932 = vadd.xlane.f32.xlu0 %v931
        %v933 = vpop.xlane.xlu0 %932
        %v934 = vadd.f32 %v644, %v645
        %v935 = vadd.f32 %v934, %v646
        %v936 = vadd.f32 %v935, %v647
        %937 = vadd.xlane.f32.xlu0 %v936
        %v938 = vpop.xlane.xlu0 %937
        %v939 = vadd.f32 %v648, %v649
        %v940 = vadd.f32 %v939, %v650
        %v941 = vadd.f32 %v940, %v651
        %942 = vadd.xlane.f32.xlu0 %v941
        %v943 = vpop.xlane.xlu0 %942
        %v944 = vadd.f32 %v652, %v653
        %v945 = vadd.f32 %v944, %v654
        %v946 = vadd.f32 %v945, %v655
        %947 = vadd.xlane.f32.xlu0 %v946
        %v948 = vpop.xlane.xlu0 %947
        %v949 = vadd.f32 %v656, %v657
        %v950 = vadd.f32 %v949, %v658
        %v951 = vadd.f32 %v950, %v659
        %952 = vadd.xlane.f32.xlu0 %v951
        %v953 = vpop.xlane.xlu0 %952
        %v954 = vadd.f32 %v660, %v661
        %v955 = vadd.f32 %v954, %v662
        %v956 = vadd.f32 %v955, %v663
        %957 = vadd.xlane.f32.xlu0 %v956
        %v958 = vpop.xlane.xlu0 %957
        %v959 = vadd.f32 %v664, %v665
        %v960 = vadd.f32 %v959, %v666
        %v961 = vadd.f32 %v960, %v667
        %962 = vadd.xlane.f32.xlu0 %v961
        %v963 = vpop.xlane.xlu0 %962
        %v964 = vadd.f32 %v668, %v669
        %v965 = vadd.f32 %v964, %v670
        %v966 = vadd.f32 %v965, %v671
        %967 = vadd.xlane.f32.xlu0 %v966
        %v968 = vpop.xlane.xlu0 %967
        %v969 = vadd.f32 %v672, %v673
        %v970 = vadd.f32 %v969, %v674
        %v971 = vadd.f32 %v970, %v675
        %972 = vadd.xlane.f32.xlu0 %v971
        %v973 = vpop.xlane.xlu0 %972
        %v974 = vadd.f32 %v676, %v677
        %v975 = vadd.f32 %v974, %v678
        %v976 = vadd.f32 %v975, %v679
        %977 = vadd.xlane.f32.xlu0 %v976
        %v978 = vpop.xlane.xlu0 %977
        %v979 = vadd.f32 %v680, %v681
        %v980 = vadd.f32 %v979, %v682
        %v981 = vadd.f32 %v980, %v683
        %982 = vadd.xlane.f32.xlu0 %v981
        %v983 = vpop.xlane.xlu0 %982
        %v984 = vadd.f32 %v684, %v685
        %v985 = vadd.f32 %v984, %v686
        %v986 = vadd.f32 %v985, %v687
        %987 = vadd.xlane.f32.xlu0 %v986
        %v988 = vpop.xlane.xlu0 %987
        %v989 = vadd.f32 %v688, %v689
        %v990 = vadd.f32 %v989, %v690
        %v991 = vadd.f32 %v990, %v691
        %992 = vadd.xlane.f32.xlu0 %v991
        %v993 = vpop.xlane.xlu0 %992
        %v994 = vadd.f32 %v692, %v693
        %v995 = vadd.f32 %v994, %v694
        %v996 = vadd.f32 %v995, %v695
        %997 = vadd.xlane.f32.xlu0 %v996
        %v998 = vpop.xlane.xlu0 %997
        %v999 = vadd.f32 %v696, %v697
        %v1000 = vadd.f32 %v999, %v698
        %v1001 = vadd.f32 %v1000, %v699
        %1002 = vadd.xlane.f32.xlu0 %v1001
        %v1003 = vpop.xlane.xlu0 %1002
        %v1004 = vadd.f32 %v700, %v701
        %v1005 = vadd.f32 %v1004, %v702
        %v1006 = vadd.f32 %v1005, %v703
        %1007 = vadd.xlane.f32.xlu0 %v1006
        %v1008 = vpop.xlane.xlu0 %1007
        %v1009 = vadd.f32 %v704, %v705
        %v1010 = vadd.f32 %v1009, %v706
        %v1011 = vadd.f32 %v1010, %v707
        %1012 = vadd.xlane.f32.xlu0 %v1011
        %v1013 = vpop.xlane.xlu0 %1012
        %v1014 = vadd.f32 %v708, %v709
        %v1015 = vadd.f32 %v1014, %v710
        %v1016 = vadd.f32 %v1015, %v711
        %1017 = vadd.xlane.f32.xlu0 %v1016
        %v1018 = vpop.xlane.xlu0 %1017
        %v1019 = vadd.f32 %v712, %v713
        %v1020 = vadd.f32 %v1019, %v714
        %v1021 = vadd.f32 %v1020, %v715
        %1022 = vadd.xlane.f32.xlu0 %v1021
        %v1023 = vpop.xlane.xlu0 %1022
        %v1024 = vadd.f32 %v716, %v717
        %v1025 = vadd.f32 %v1024, %v718
        %v1026 = vadd.f32 %v1025, %v719
        %1027 = vadd.xlane.f32.xlu0 %v1026
        %v1028 = vpop.xlane.xlu0 %1027
        %v1029 = vadd.f32 %v720, %v721
        %v1030 = vadd.f32 %v1029, %v722
        %v1031 = vadd.f32 %v1030, %v723
        %1032 = vadd.xlane.f32.xlu0 %v1031
        %v1033 = vpop.xlane.xlu0 %1032
        %v1034 = vadd.f32 %v724, %v725
        %v1035 = vadd.f32 %v1034, %v726
        %v1036 = vadd.f32 %v1035, %v727
        %1037 = vadd.xlane.f32.xlu0 %v1036
        %v1038 = vpop.xlane.xlu0 %1037
        %v1039 = vadd.f32 %v728, %v729
        %v1040 = vadd.f32 %v1039, %v730
        %v1041 = vadd.f32 %v1040, %v731
        %1042 = vadd.xlane.f32.xlu0 %v1041
        %v1043 = vpop.xlane.xlu0 %1042
        %v1044 = vadd.f32 %v732, %v733
        %v1045 = vadd.f32 %v1044, %v734
        %v1046 = vadd.f32 %v1045, %v735
        %1047 = vadd.xlane.f32.xlu0 %v1046
        %v1048 = vpop.xlane.xlu0 %1047
        %v1049 = vadd.f32 %v736, %v737
        %v1050 = vadd.f32 %v1049, %v738
        %v1051 = vadd.f32 %v1050, %v739
        %1052 = vadd.xlane.f32.xlu0 %v1051
        %v1053 = vpop.xlane.xlu0 %1052
        %v1054 = vadd.f32 %v740, %v741
        %v1055 = vadd.f32 %v1054, %v742
        %v1056 = vadd.f32 %v1055, %v743
        %1057 = vadd.xlane.f32.xlu0 %v1056
        %v1058 = vpop.xlane.xlu0 %1057
        %v1059 = vadd.f32 %v744, %v745
        %v1060 = vadd.f32 %v1059, %v746
        %v1061 = vadd.f32 %v1060, %v747
        %1062 = vadd.xlane.f32.xlu0 %v1061
        %v1063 = vpop.xlane.xlu0 %1062
        %v1064 = vadd.f32 %v748, %v749
        %v1065 = vadd.f32 %v1064, %v750
        %v1066 = vadd.f32 %v1065, %v751
        %1067 = vadd.xlane.f32.xlu0 %v1066
        %v1068 = vpop.xlane.xlu0 %1067
        %v1069 = vadd.f32 %v752, %v753
        %v1070 = vadd.f32 %v1069, %v754
        %v1071 = vadd.f32 %v1070, %v755
        %1072 = vadd.xlane.f32.xlu0 %v1071
        %v1073 = vpop.xlane.xlu0 %1072
        %v1074 = vadd.f32 %v756, %v757
        %v1075 = vadd.f32 %v1074, %v758
        %v1076 = vadd.f32 %v1075, %v759
        %1077 = vadd.xlane.f32.xlu0 %v1076
        %v1078 = vpop.xlane.xlu0 %1077
        %v1079 = vadd.f32 %v760, %v761
        %v1080 = vadd.f32 %v1079, %v762
        %v1081 = vadd.f32 %v1080, %v763
        %1082 = vadd.xlane.f32.xlu0 %v1081
        %v1083 = vpop.xlane.xlu0 %1082
        %v1084 = vld [vmem:[#allocation7] sm:$0x1]
        %1085 = vmatprep.subr.mxu0 0.0
        %1086 = vmatpush1.msra.mxu0 %v768
        %1087 = vmatprep.subr.mxu0 0.0
        %1088 = vmatpush1.msra.mxu0 %v773
        %1089 = vmatprep.subr.mxu0 0.0
        %1090 = vmatpush1.msra.mxu0 %v778
        %1091 = vmatprep.subr.mxu0 0.0
        %1092 = vmatpush1.msra.mxu0 %v783
        %1093 = vmatprep.subr.mxu0 0.0
        %1094 = vmatpush1.msra.mxu0 %v788
        %1095 = vmatprep.subr.mxu0 0.0
        %1096 = vmatpush1.msra.mxu0 %v793
        %1097 = vmatprep.subr.mxu0 0.0
        %1098 = vmatpush1.msra.mxu0 %v798
        %1099 = vmatprep.subr.mxu0 0.0
        %1100 = vmatpush1.msra.mxu0 %v803
        %1101 = vmatprep.subr.mxu0 0.0
        %1102 = vmatpush1.msra.mxu0 %v808
        %1103 = vmatprep.subr.mxu0 0.0
        %1104 = vmatpush1.msra.mxu0 %v813
        %1105 = vmatprep.subr.mxu0 0.0
        %1106 = vmatpush1.msra.mxu0 %v818
        %1107 = vmatprep.subr.mxu0 0.0
        %1108 = vmatpush1.msra.mxu0 %v823
        %1109 = vmatprep.subr.mxu0 0.0
        %1110 = vmatpush1.msra.mxu0 %v828
        %1111 = vmatprep.subr.mxu0 0.0
        %1112 = vmatpush1.msra.mxu0 %v833
        %1113 = vmatprep.subr.mxu0 0.0
        %1114 = vmatpush1.msra.mxu0 %v838
        %1115 = vmatprep.subr.mxu0 0.0
        %1116 = vmatpush1.msra.mxu0 %v843
        %1117 = vmatprep.subr.mxu0 0.0
        %1118 = vmatpush1.msra.mxu0 %v848
        %1119 = vmatprep.subr.mxu0 0.0
        %1120 = vmatpush1.msra.mxu0 %v853
        %1121 = vmatprep.subr.mxu0 0.0
        %1122 = vmatpush1.msra.mxu0 %v858
        %1123 = vmatprep.subr.mxu0 0.0
        %1124 = vmatpush1.msra.mxu0 %v863
        %1125 = vmatprep.subr.mxu0 0.0
        %1126 = vmatpush1.msra.mxu0 %v868
        %1127 = vmatprep.subr.mxu0 0.0
        %1128 = vmatpush1.msra.mxu0 %v873
        %1129 = vmatprep.subr.mxu0 0.0
        %1130 = vmatpush1.msra.mxu0 %v878
        %1131 = vmatprep.subr.mxu0 0.0
        %1132 = vmatpush1.msra.mxu0 %v883
        %1133 = vmatprep.subr.mxu0 0.0
        %1134 = vmatpush1.msra.mxu0 %v888
        %1135 = vmatprep.subr.mxu0 0.0
        %1136 = vmatpush1.msra.mxu0 %v893
        %1137 = vmatprep.subr.mxu0 0.0
        %1138 = vmatpush1.msra.mxu0 %v898
        %1139 = vmatprep.subr.mxu0 0.0
        %1140 = vmatpush1.msra.mxu0 %v903
        %1141 = vmatprep.subr.mxu0 0.0
        %1142 = vmatpush1.msra.mxu0 %v908
        %1143 = vmatprep.subr.mxu0 0.0
        %1144 = vmatpush1.msra.mxu0 %v913
        %1145 = vmatprep.subr.mxu0 0.0
        %1146 = vmatpush1.msra.mxu0 %v918
        %1147 = vmatprep.subr.mxu0 0.0
        %1148 = vmatpush1.msra.mxu0 %v923
        %1149 = vmatprep.mubr.f32.mxu0 %v433
        %1150 = vmatmul.mubr.f32.gmra.mrb[0].mxu0 %v396
        %v1151 = vpop.f32.mrb[0].mxu0
        %v1152 = vadd.f32 0.0, %v1151
        %v1153 = vpop.f32.mrb[0].mxu0
        %1154 = vdwg.mxu0
        %1155 = vmatprep.subr.mxu0 0.0
        %1156 = vmatpush1.msra.mxu0 %v928
        %1157 = vmatprep.subr.mxu0 0.0
        %1158 = vmatpush1.msra.mxu0 %v933
        %1159 = vmatprep.subr.mxu0 0.0
        %1160 = vmatpush1.msra.mxu0 %v938
        %1161 = vmatprep.subr.mxu0 0.0
        %1162 = vmatpush1.msra.mxu0 %v943
        %1163 = vmatprep.subr.mxu0 0.0
        %1164 = vmatpush1.msra.mxu0 %v948
        %1165 = vmatprep.subr.mxu0 0.0
        %1166 = vmatpush1.msra.mxu0 %v953
        %1167 = vmatprep.subr.mxu0 0.0
        %1168 = vmatpush1.msra.mxu0 %v958
        %1169 = vmatprep.subr.mxu0 0.0
        %1170 = vmatpush1.msra.mxu0 %v963
        %1171 = vmatprep.subr.mxu0 0.0
        %1172 = vmatpush1.msra.mxu0 %v968
        %1173 = vmatprep.subr.mxu0 0.0
        %1174 = vmatpush1.msra.mxu0 %v973
        %1175 = vmatprep.subr.mxu0 0.0
        %1176 = vmatpush1.msra.mxu0 %v978
        %1177 = vmatprep.subr.mxu0 0.0
        %1178 = vmatpush1.msra.mxu0 %v983
        %1179 = vmatprep.subr.mxu0 0.0
        %1180 = vmatpush1.msra.mxu0 %v988
        %1181 = vmatprep.subr.mxu0 0.0
        %1182 = vmatpush1.msra.mxu0 %v993
        %1183 = vmatprep.subr.mxu0 0.0
        %1184 = vmatpush1.msra.mxu0 %v998
        %1185 = vmatprep.subr.mxu0 0.0
        %1186 = vmatpush1.msra.mxu0 %v1003
        %1187 = vmatprep.subr.mxu0 0.0
        %1188 = vmatpush1.msra.mxu0 %v1008
        %1189 = vmatprep.subr.mxu0 0.0
        %1190 = vmatpush1.msra.mxu0 %v1013
        %1191 = vmatprep.subr.mxu0 0.0
        %1192 = vmatpush1.msra.mxu0 %v1018
        %1193 = vmatprep.subr.mxu0 0.0
        %1194 = vmatpush1.msra.mxu0 %v1023
        %1195 = vmatprep.subr.mxu0 0.0
        %1196 = vmatpush1.msra.mxu0 %v1028
        %1197 = vmatprep.subr.mxu0 0.0
        %1198 = vmatpush1.msra.mxu0 %v1033
        %1199 = vmatprep.subr.mxu0 0.0
        %1200 = vmatpush1.msra.mxu0 %v1038
        %1201 = vmatprep.subr.mxu0 0.0
        %1202 = vmatpush1.msra.mxu0 %v1043
        %1203 = vmatprep.subr.mxu0 0.0
        %1204 = vmatpush1.msra.mxu0 %v1048
        %1205 = vmatprep.subr.mxu0 0.0
        %1206 = vmatpush1.msra.mxu0 %v1053
        %1207 = vmatprep.subr.mxu0 0.0
        %1208 = vmatpush1.msra.mxu0 %v1058
        %1209 = vmatprep.subr.mxu0 0.0
        %1210 = vmatpush1.msra.mxu0 %v1063
        %1211 = vmatprep.subr.mxu0 0.0
        %1212 = vmatpush1.msra.mxu0 %v1068
        %1213 = vmatprep.subr.mxu0 0.0
        %1214 = vmatpush1.msra.mxu0 %v1073
        %1215 = vmatprep.subr.mxu0 0.0
        %1216 = vmatpush1.msra.mxu0 %v1078
        %1217 = vmatprep.subr.mxu0 0.0
        %1218 = vmatpush1.msra.mxu0 %v1083
        %1219 = vmatprep.mubr.f32.mxu0 %v507
        %1220 = vmatmul.mubr.f32.gmra.mrb[0].mxu0 %v470
        %v1221 = vpop.f32.mrb[0].mxu0
        %v1222 = vadd.f32 %v1152, %v1221
        %v1223 = vpop.f32.mrb[0].mxu0
        %1224 = vdwg.mxu0
        %v1225 = vadd.f32 %v1084, %v1222
        %vm1226 = vcmask 0
        %1227 = vst.msk [vmem:[#allocation7] sm:$0x1] %vm1226, %v1225
        // Predicated region
        $region41: #{test_gradient_forward.1} parent=27 // pred_check
          %p1228 = pneg %p110
        $region42: #{test_gradient_forward.1} parent=27 // pred_check_branch
          %1230 = sbr.rel (%p1228) target = $region44
        $region43: #{test_gradient_forward.1} parent=27 // pred_region
          %s1232 = ssub.s32 16, 16
          %1233 = vsyncadd [#allocation4], %s1232
          %s1234 = smul.addr %s24, 16
          %s1235 = scalar_lea.hbm %s2, %s1234
          %s1237 = sshll.u32 [#allocation7], 4
          %s1238 = int_to_ptr.vmem [resolvable:$true] %s1237
          %1240 = dma.vmem_to_hbm [thread:$0]  %s1238, 16, %s1235, [#allocation4]
        $region44: #{test_gradient_forward.1} parent=27 // pred_fallthru
          _
        // Predicated region
        $region45: #{test_gradient_forward.1} parent=27 // pred_check
          %p1241 = pneg %p110
        $region46: #{test_gradient_forward.1} parent=27 // pred_check_branch
          %1243 = sbr.rel (%p1241) target = $region48
        $region47: #{test_gradient_forward.1} parent=27 // pred_region
          %1244 = dma.done [#allocation4], 16
        $region48: #{test_gradient_forward.1} parent=27 // pred_fallthru
          _
      $region28: #{test_gradient_forward.1} parent=5 // pred_fallthru
        _
      %p1245 = scmp.le.s32.totalorder 2, %s15
      // Predicated region
      $region49: #{test_gradient_forward.1} parent=5 // pred_check
        %p1246 = pneg %p1245
      $region50: #{test_gradient_forward.1} parent=5 // pred_check_branch
        %1248 = sbr.rel (%p1246) target = $region52
      $region51: #{test_gradient_forward.1} parent=5 // pred_region
        %s1249 = ssub.s32 %s15, 2
      $region52: #{test_gradient_forward.1} parent=5 // pred_fallthru
        _
    $region6: #{test_gradient_forward.1} parent=1 // loop_footer
      %s19 = sadd.s32 1, %s15
    $region7: #{test_gradient_forward.1} parent=1 // loop_footer_branch
      %14 = sbr.rel target = $region3
    $region8: #{test_gradient_forward.1} parent=1 // loop_exit
      _
    %1250 = vsyncpa [#allocation3], 1
    %s1251 = scalar_lea.sflag [#allocation3], 1
    %1252 = vsyncpa %s1251, 1
    %1253 = vsyncpa [#allocation6], 1
    %s1254 = scalar_lea.sflag [#allocation6], 1
    %1255 = vsyncpa %s1254, 1
    %1256 = vsyncpa [#allocation4], 1
    %s1257 = scalar_lea.sflag [#allocation4], 1
    %1258 = vsyncpa %s1257, 1

</llo_original>
